<compile_context>
chip_gen: v7x
topology: tpu7x:2x2x1
jax: 0.10.0
libtpu: 0.0.40
codegen_flags: <defaults>
</compile_context>

<pallas_src>
import math

import jax
import jax.numpy as jnp
from jax.experimental import pallas as pl
from jax.experimental.pallas import tpu as pltpu

_LANE = 128                              # vreg lane width
_MAX_LAST = 8192                         # keep lane dim in the 512-8192 sweet spot
_TARGET_TILE_BYTES = 4 * 1024 * 1024     # ~4 MiB per operand block
_VMEM_LIMIT_BYTES = 32 * 1024 * 1024     # 2 ops x 2 bufs x 4 MiB = 16 MiB << 32 MiB


def _copy_kernel(x_ref, o_ref):
    # View has no compute: identity copy of one lane-dense tile.
    o_ref[...] = x_ref[...]


def _sublane_multiple(itemsize: int) -> int:
    # 8 sublanes of 32-bit; sub-32-bit dtypes pack along sublanes.
    return max(8, 32 // max(1, itemsize))


def _pick_flatten_shape(total: int, sublane_mult: int):
    """Pick (rows, last): `last` a multiple of 128 dividing `total` (lane-dense),
    preferring `rows` that are a multiple of the dtype's packed-sublane count.
    Returns None if no lane-aligned factorization exists."""
    if total < _LANE or total % _LANE != 0:
        return None
    cands = [l for l in range(_LANE, min(total, _MAX_LAST) + 1, _LANE)
             if total % l == 0]
    if not cands:
        return None
    aligned = [l for l in cands if (total // l) % sublane_mult == 0]
    last = max(aligned) if aligned else max(cands)
    return total // last, last


def _pick_row_tile(rows: int, last: int, itemsize: int, sublane_mult: int) -> int:
    """Rows per tile: a multiple of the packed sublane count, ~4 MiB per block,
    preferring an exact divisor of `rows` and at least 2 grid steps."""
    if rows <= sublane_mult:
        return rows  # full extent (block shape == full array dim is allowed)
    bytes_per_row = last * itemsize
    tr = max(sublane_mult,
             (_TARGET_TILE_BYTES // bytes_per_row) // sublane_mult * sublane_mult)
    tr = min(tr, rows)
    if tr >= rows:
        # Cap at half the rows so the "parallel" grid axis has >= 2 steps
        # (lets v7x's two TensorCores both issue DMAs).
        half = (rows // 2) // sublane_mult * sublane_mult
        if half >= sublane_mult:
            tr = half
        else:
            return rows
    # Prefer an exact divisor of rows: no ragged final tile -> unmasked stores.
    for cand in range(tr, sublane_mult - 1, -sublane_mult):
        if rows % cand == 0:
            return cand
    return tr  # ragged tail: still correct (Pallas masks the partial block)


def _identity_copy_2d(x2d: jax.Array, donate: bool) -> jax.Array:
    """Copy a 2-D lane-dense array through a tiled, double-buffered Pallas kernel."""
    rows, last = x2d.shape
    sublane_mult = _sublane_multiple(x2d.dtype.itemsize)
    tr = _pick_row_tile(rows, last, x2d.dtype.itemsize, sublane_mult)
    grid = (pl.cdiv(rows, tr),)
    kwargs = {}
    if donate:
        # Only alias when the caller actually donates the input; otherwise XLA
        # inserts a defensive copy (an extra full HBM pass).
        kwargs["input_output_aliases"] = {0: 0}
    return pl.pallas_call(
        _copy_kernel,
        out_shape=jax.ShapeDtypeStruct(x2d.shape, x2d.dtype),
        grid=grid,
        in_specs=[pl.BlockSpec((tr, last), lambda i: (i, 0))],
        out_specs=pl.BlockSpec((tr, last), lambda i: (i, 0)),
        compiler_params=pltpu.CompilerParams(
            dimension_semantics=("parallel",),
            vmem_limit_bytes=_VMEM_LIMIT_BYTES,
        ),
        **kwargs,
    )(x2d)


def _resolve_view_size(total: int, size) -> tuple:
    """Resolve a torch.view-style size (at most one -1), validating it."""
    size = list(size)
    neg = [i for i, s in enumerate(size) if s == -1]
    if len(neg) > 1:
        raise ValueError("only one dimension can be inferred (-1)")
    if neg:
        known = 1
        for s in size:
            if s != -1:
                known *= s
        if known == 0 or total % known != 0:
            raise ValueError(f"shape {tuple(size)} is invalid for input of size {total}")
        size[neg[0]] = total // known
    if math.prod(size) != total:
        raise ValueError(f"shape {tuple(size)} is invalid for input of size {total}")
    return tuple(size)


def view_pallas(tensor: jax.Array, size, use_copy_kernel: bool = True,
                donate: bool = False) -> jax.Array:
    """Equivalent of PyTorch `tensor.view(size)` (reshape semantics in JAX).

    With `use_copy_kernel=False` this is metadata-only (the optimal path).
    With `use_copy_kernel=True` the data is materialized through a tiled,
    lane-dense Pallas identity-copy kernel (bit-identical result).
    """
    total = tensor.size
    out_shape = _resolve_view_size(total, size)

    if total == 0 or not use_copy_kernel:
        return jnp.reshape(tensor, out_shape)

    sublane_mult = _sublane_multiple(tensor.dtype.itemsize)
    shape2d = _pick_flatten_shape(total, sublane_mult)
    if shape2d is None:
        # Element count not a multiple of 128: the reshape itself is free and
        # correct; skip the kernel rather than build a non-tileable block.
        return jnp.reshape(tensor, out_shape)
    x2d = jnp.reshape(tensor, shape2d)
    y2d = _identity_copy_2d(x2d, donate)
    return jnp.reshape(y2d, out_shape)


class View:
    """Mirror of the PyTorch module: View(size)(tensor) == tensor.view(size)."""

    def __init__(self, size):
        self.size = tuple(size)

    def __call__(self, tensor):
        return view_pallas(tensor, self.size)


if __name__ == "__main__":
    key = jax.random.PRNGKey(0)
    # NCHW input, as PyTorch conv stacks would produce before a View.
    N, C, H, W = 2, 4, 16, 16
    x = jax.random.normal(key, (N, C, H, W), dtype=jnp.float32)

    view_fn = jax.jit(view_pallas,
                      static_argnames=("size", "use_copy_kernel", "donate"))

    # Typical flatten-before-linear usage: view to (N, C*H*W).
    y = jax.block_until_ready(view_fn(x, size=(N, -1)))
    expected = jnp.reshape(x, (N, C * H * W))
    assert y.shape == (N, C * H * W), y.shape
    assert y.dtype == x.dtype
    assert bool(jnp.array_equal(y, expected))

    # A second view shape; the kernel's 2-D flatten (and lane density) depends
    # only on the element count, not the requested view shape.
    y2 = jax.block_until_ready(view_fn(x, size=(-1, H * W)))
    assert y2.shape == (N * C, H * W)
    assert bool(jnp.array_equal(y2, jnp.reshape(x, (N * C, H * W))))

    # bf16 exercises the dtype-aware (16-row) sublane packing.
    xb = x.astype(jnp.bfloat16)
    yb = jax.block_until_ready(view_fn(xb, size=(N, C, H * W)))
    assert yb.shape == (N, C, H * W)
    assert bool(jnp.array_equal(yb, jnp.reshape(xb, (N, C, H * W))))

    # Odd element count (not a multiple of 128): metadata-only fallback.
    xo = jax.random.normal(key, (3, 5, 7), dtype=jnp.float32)
    yo = jax.block_until_ready(view_fn(xo, size=(-1,)))
    assert yo.shape == (105,)
    assert bool(jnp.array_equal(yo, jnp.reshape(xo, (105,))))

    # Metadata-only (recommended) path.
    y_free = jax.block_until_ready(view_fn(x, size=(N, -1), use_copy_kernel=False))
    assert bool(jnp.array_equal(y_free, expected))

    print("KERNEL_OK")
</pallas_src>

<mosaic_0001>
module attributes {stable_mosaic.version = 11 : i64} {
  func.func @_copy_kernel(%arg0: i32, %arg1: memref<8x256xf32, #tpu.memory_space<vmem>>, %arg2: memref<8x256xf32, #tpu.memory_space<vmem>>) attributes {dimension_semantics = [#tpu.dimension_semantics<parallel>], iteration_bounds = array<i64: 1>, scalar_prefetch = 0 : i64, scratch_operands = 0 : i64, tpu.core_type = #tpu.core_type<tc>, window_params = [{transform_indices = @transform_0, window_bounds = array<i64: 8, 256>}, {transform_indices = @transform_1, window_bounds = array<i64: 8, 256>}]} {
    %c0 = arith.constant 0 : index
    %c0_0 = arith.constant 0 : index
    %0 = vector.load %arg1[%c0, %c0_0] : memref<8x256xf32, #tpu.memory_space<vmem>>, vector<8x256xf32>
    %c0_1 = arith.constant 0 : index
    %c0_2 = arith.constant 0 : index
    %1 = vector.load %arg2[%c0_1, %c0_2] : memref<8x256xf32, #tpu.memory_space<vmem>>, vector<8x256xf32>
    tpu.vector_store %arg2[%c0_1, %c0_2], %0 {strides = array<i32>} : memref<8x256xf32, #tpu.memory_space<vmem>>, vector<8x256xf32>,
    return
  }
  func.func @transform_0(%arg0: i32) -> (i32, i32) {
    %c0_i32 = arith.constant 0 : i32
    %c0_i32_0 = arith.constant 0 : i32
    return %arg0, %c0_i32 : i32, i32
  }
  func.func @transform_1(%arg0: i32) -> (i32, i32) {
    %c0_i32 = arith.constant 0 : i32
    %c0_i32_0 = arith.constant 0 : i32
    return %arg0, %c0_i32 : i32, i32
  }
}

</mosaic_0001>

<llo_original>
// kernel: view_pallas.1
$region0: #{view_pallas.1}
  #allocation0 [shape = 'u32[]', space=smem, size = 0x4, offset = 0x4, fixed_abs, tag = 'smem constant byte address 0x4 - core index']
  #allocation1 [shape = 'u32[144,128]{1,0:T(1,128)}', space=vmem, size = 0x12000, scoped, tag = 'internal scratch']
  %s0 = inlined_call_operand.vmem [shape: f32[8,256], index: 0, kind: input, shape index: {}]
  %s1 = inlined_call_operand.vmem [shape: f32[8,256], index: 1, kind: output, shape index: {}]
  %s2 = sld [smem:[#allocation0]]
  $region14: #{view_pallas.1} parent=0
    _
  %s4 = ssub.s32 1, %s2
  %s5 = scalar_select 0, %s4, %s2
  // Predicated region
  $region2: #{view_pallas.1} parent=0 // pred_check
    _
  $region3: #{view_pallas.1} parent=0 // pred_check_branch
    %7 = sbr.rel (0) target = $region5
  $region4: #{view_pallas.1} parent=0 // pred_region
    _
  $region5: #{view_pallas.1} parent=0 // pred_fallthru
    _
  %v8 = vld [vmem:[%s0] sm:$0xff]
  %v9 = vld [vmem:[%s0 + $0x8] sm:$0xff]
  %10 = vst [vmem:[%s1] sm:$0xff] %v8
  %11 = vst [vmem:[%s1 + $0x8] sm:$0xff] %v9
  // Predicated region
  $region6: #{view_pallas.1} parent=0 // pred_check
    _
  $region7: #{view_pallas.1} parent=0 // pred_check_branch
    %13 = sbr.rel (0) target = $region9
  $region8: #{view_pallas.1} parent=0 // pred_region
    _
  $region9: #{view_pallas.1} parent=0 // pred_fallthru
    _
  // Predicated region
  $region10: #{view_pallas.1} parent=0 // pred_check
    _
  $region11: #{view_pallas.1} parent=0 // pred_check_branch
    %15 = sbr.rel (0) target = $region13
  $region12: #{view_pallas.1} parent=0 // pred_region
    _
  $region13: #{view_pallas.1} parent=0 // pred_fallthru
    _

</llo_original>
